<compile_context>
chip_gen: v5e
topology: v5e:2x2
jax: 0.10.0
libtpu: 0.0.40
codegen_flags: <defaults>
</compile_context>

<pallas_src>
import math
import jax
import jax.numpy as jnp
import numpy as np
from jax.experimental import pallas as pl
from jax.experimental.pallas import tpu as pltpu

# --- small, module-consistent hyper-parameters ("opts") ---
BATCH = 2            # batch_s
GRAPH = 8            # opts.graph_size (sequence length N)
EMB   = 32           # opts.embedding_dim
HEADS = 4            # opts.encoder_head_num
KEYD  = EMB // HEADS # key_dim
FFH   = 64           # opts.feed_forward_dim
EPS   = 1e-5         # BatchNorm1d default eps

# --- single parameter-slab layout (all blocks lane-0 aligned, 8-aligned row starts) ---
ROW_QKV  = 0                         # (3H*K, E) = (96, 32): per-head-transposed Wq*s|Wk|Wv
ROW_WC   = ROW_QKV + 3 * HEADS * KEYD       # 96:  (E, E)   multi_head_combine weight
ROW_W1   = ROW_WC + EMB                     # 128: (E, FFH) feed-forward W1
ROW_W2   = ROW_W1 + EMB                     # 160: (FFH, E) feed-forward W2
ROW_BIAS = ROW_W2 + FFH                     # 224: 8-row bias / gamma / beta block
SLAB_ROWS = ROW_BIAS + 8                    # 232 (multiple of 8)
SLAB_LANES = 128


def encoder_layer_kernel(x_ref, p_ref, out_ref):
    B, N, E, H, K, FF = BATCH, GRAPH, EMB, HEADS, KEYD, FFH
    BN = B * N
    A = 3 * H                                   # q/k/v x heads

    x2 = x_ref[...]                             # (BN, E) lane-friendly tokens

    # --- unpack the single parameter slab (static, lane-0, 8-row-aligned slices) ---
    wqkvT = p_ref[ROW_QKV:ROW_QKV + A * K, 0:E].reshape(A, K, E)   # (12, 8, 32), Wq pre-scaled
    wc3   = p_ref[ROW_WC:ROW_WC + E, 0:E].reshape(H, K, E)         # (4, 8, 32)
    w1    = p_ref[ROW_W1:ROW_W1 + E, 0:FF]                         # (32, 64)
    w2    = p_ref[ROW_W2:ROW_W2 + FF, 0:E]                         # (64, 32)
    biasv = p_ref[ROW_BIAS:ROW_BIAS + 8, :]                        # (8, 128)
    bc, g1, be1 = biasv[0:1, 0:E], biasv[1:2, 0:E], biasv[2:3, 0:E]
    b2, g2, be2 = biasv[3:4, 0:E], biasv[4:5, 0:E], biasv[5:6, 0:E]
    b1 = biasv[6:7, 0:FF]

    # --- QKV projection with heads already leading: (3H, BN, K); no head slicing needed.
    #     1/sqrt(key_dim) is folded into the Wq block of the slab. ---
    xb = jnp.broadcast_to(x2, (A, BN, E))
    qkvh = jnp.einsum('ate,ake->atk', xb, wqkvT,
                      preferred_element_type=jnp.float32)          # (12, BN, K)
    qkvh = qkvh.reshape(A * B, N, K)                               # row = a*B + b (tile-aligned)
    q_h = qkvh[0:H * B]                                            # (H*B, N, K), pre-scaled
    k_h = qkvh[H * B:2 * H * B]
    v_h = qkvh[2 * H * B:3 * H * B]

    # --- one batched score matmul, ONE softmax (normalization deferred past p@v) ---
    s = jnp.einsum('ank,amk->anm', q_h, k_h, preferred_element_type=jnp.float32)
    s = s - jnp.max(s, axis=-1, keepdims=True)                     # stable softmax
    p = jnp.exp(s)
    denom = jnp.sum(p, axis=-1, keepdims=True)                     # (H*B, N, 1)
    o = jnp.einsum('anm,amk->ank', p, v_h, preferred_element_type=jnp.float32)
    o = o / denom            # exact softmax; scales N*K elements instead of N*N

    # --- head combine folded into a batched contraction + head-sum (== out_concat @ Wc) ---
    o3 = o.reshape(H, BN, K)                                       # [h, b*N+n, k]
    mh = jnp.sum(jnp.einsum('htk,hke->hte', o3, wc3,
                            preferred_element_type=jnp.float32), axis=0) + bc   # (BN, E)

    # --- BatchNorm1d (training-mode batch stats over B*N rows, biased variance) ---
    def batch_norm(a, gamma, beta):
        mean = jnp.mean(a, axis=0, keepdims=True)
        var = jnp.mean((a - mean) ** 2, axis=0, keepdims=True)
        return (a - mean) * jax.lax.rsqrt(var + EPS) * gamma + beta

    # Add & Norm 1
    out1 = batch_norm(x2 + mh, g1, be1)

    # Feed-forward: W2(relu(W1(out1)))
    h1 = jnp.maximum(
        jnp.dot(out1, w1, preferred_element_type=jnp.float32) + b1, 0.0)
    ff = jnp.dot(h1, w2, preferred_element_type=jnp.float32) + b2

    # Add & Norm 2
    out_ref[...] = batch_norm(out1 + ff, g2, be2)


def pack_params(params):
    """One-time host-side packing of all 13 parameters into a single lane-dense slab."""
    wq, wk, wv, wc, bc, g1, be1, w1, b1, w2, b2, g2, be2 = [
        np.asarray(p, np.float32) for p in params]
    E, H, K, FF = EMB, HEADS, KEYD, FFH
    scale = np.float32(1.0 / math.sqrt(K))

    def per_head_T(w):                     # (E, H*K) -> (H, K, E)
        return w.reshape(E, H, K).transpose(1, 2, 0)

    slab = np.zeros((SLAB_ROWS, SLAB_LANES), np.float32)
    qkvT = np.concatenate([per_head_T(wq * scale), per_head_T(wk), per_head_T(wv)],
                          axis=0)                                  # (3H, K, E)
    slab[ROW_QKV:ROW_QKV + 3 * H * K, :E] = qkvT.reshape(3 * H * K, E)
    slab[ROW_WC:ROW_WC + E, :E] = wc
    slab[ROW_W1:ROW_W1 + E, :FF] = w1
    slab[ROW_W2:ROW_W2 + FF, :E] = w2
    r = ROW_BIAS
    slab[r + 0, :E] = bc.reshape(-1)
    slab[r + 1, :E] = g1.reshape(-1)
    slab[r + 2, :E] = be1.reshape(-1)
    slab[r + 3, :E] = b2.reshape(-1)
    slab[r + 4, :E] = g2.reshape(-1)
    slab[r + 5, :E] = be2.reshape(-1)
    slab[r + 6, :FF] = b1.reshape(-1)
    return jnp.asarray(slab)


def encoder_layer(x, slab):
    B, N, E = x.shape
    BN = B * N
    x2 = x.reshape(BN, E)                                          # lane-friendly 2-D I/O

    flops = (2 * 3 * HEADS * BN * E * KEYD       # batched QKV projection
             + 2 * (BATCH * HEADS) * N * N * KEYD * 2   # scores + p@v
             + 2 * HEADS * BN * KEYD * E         # head combine
             + 2 * BN * E * FFH                  # FF1
             + 2 * BN * FFH * E)                 # FF2
    transcendentals = BATCH * HEADS * N * N + BATCH * HEADS * N + 4 * E
    bytes_accessed = 4 * (BN * E + SLAB_ROWS * SLAB_LANES + BN * E)

    vmem = pl.BlockSpec(memory_space=pltpu.MemorySpace.VMEM)
    out2 = pl.pallas_call(
        encoder_layer_kernel,
        out_shape=jax.ShapeDtypeStruct((BN, E), jnp.float32),
        in_specs=[vmem, vmem],
        out_specs=vmem,
        cost_estimate=pl.CostEstimate(flops=flops,
                                      transcendentals=transcendentals,
                                      bytes_accessed=bytes_accessed),
    )(x2, slab)
    return out2.reshape(B, N, E)


# --- pure-JAX reference (mirrors the PyTorch forward exactly) ---
def ref_forward(x, params):
    wq, wk, wv, wc, bc, g1, be1, w1, b1, w2, b2, g2, be2 = params
    B, N, E = x.shape
    x2 = x.reshape(B * N, E)
    q = (x2 @ wq).reshape(B, N, HEADS, KEYD).transpose(0, 2, 1, 3)
    k = (x2 @ wk).reshape(B, N, HEADS, KEYD).transpose(0, 2, 1, 3)
    v = (x2 @ wv).reshape(B, N, HEADS, KEYD).transpose(0, 2, 1, 3)
    s = jnp.einsum('bhnk,bhmk->bhnm', q, k) / math.sqrt(KEYD)
    w = jax.nn.softmax(s, axis=-1)
    o = jnp.einsum('bhnm,bhmk->bhnk', w, v).transpose(0, 2, 1, 3).reshape(B * N, E)
    mh = o @ wc + bc

    def bn(a, g, b):
        mean = a.mean(0, keepdims=True)
        var = ((a - mean) ** 2).mean(0, keepdims=True)
        return (a - mean) / jnp.sqrt(var + EPS) * g + b

    out1 = bn(x2 + mh, g1, be1)
    ff = jnp.maximum(out1 @ w1 + b1, 0.0) @ w2 + b2
    out3 = bn(out1 + ff, g2, be2)
    return out3.reshape(B, N, E)


def make_params(key):
    def linear_w(k, fan_in, fan_out):
        bound = 1.0 / math.sqrt(fan_in)
        return jax.random.uniform(k, (fan_in, fan_out), jnp.float32, -bound, bound)

    ks = jax.random.split(key, 8)
    wq = linear_w(ks[0], EMB, EMB)
    wk = linear_w(ks[1], EMB, EMB)
    wv = linear_w(ks[2], EMB, EMB)
    wc = linear_w(ks[3], EMB, EMB)
    bc = jax.random.uniform(ks[4], (1, EMB), jnp.float32,
                            -1.0 / math.sqrt(EMB), 1.0 / math.sqrt(EMB))
    w1 = linear_w(ks[5], EMB, FFH)
    b1 = jax.random.uniform(ks[6], (1, FFH), jnp.float32,
                            -1.0 / math.sqrt(EMB), 1.0 / math.sqrt(EMB))
    w2 = linear_w(ks[7], FFH, EMB)
    b2 = jnp.zeros((1, EMB), jnp.float32)
    g1 = jnp.ones((1, EMB), jnp.float32)   # BatchNorm affine init: gamma=1, beta=0
    be1 = jnp.zeros((1, EMB), jnp.float32)
    g2 = jnp.ones((1, EMB), jnp.float32)
    be2 = jnp.zeros((1, EMB), jnp.float32)
    return (wq, wk, wv, wc, bc, g1, be1, w1, b1, w2, b2, g2, be2)


if __name__ == "__main__":
    key = jax.random.PRNGKey(0)
    kx, kp = jax.random.split(key)
    x = jax.random.normal(kx, (BATCH, GRAPH, EMB), jnp.float32)
    params = make_params(kp)

    slab = pack_params(params)           # one-time packing (hoisted out of the forward)

    out = encoder_layer(x, slab)
    out = jax.block_until_ready(out)

    ref = ref_forward(x, params)
    # Exact softmax (no approx reciprocal) -> tight f32 tolerance.
    np.testing.assert_allclose(np.asarray(out), np.asarray(ref), rtol=1e-4, atol=1e-4)

    print("KERNEL_OK")
</pallas_src>

<mosaic_0001>
module attributes {stable_mosaic.version = 11 : i64} {
  func.func @encoder_layer_kernel(%arg0: memref<16x32xf32, #tpu.memory_space<vmem>>, %arg1: memref<232x128xf32, #tpu.memory_space<vmem>>, %arg2: memref<16x32xf32, #tpu.memory_space<vmem>>) attributes {dimension_semantics = [], scalar_prefetch = 0 : i64, scratch_operands = 0 : i64, tpu.core_type = #tpu.core_type<tc>} {
    %c0 = arith.constant 0 : index
    %c0_0 = arith.constant 0 : index
    %0 = vector.load %arg0[%c0, %c0_0] : memref<16x32xf32, #tpu.memory_space<vmem>>, vector<16x32xf32>
    %c0_1 = arith.constant 0 : index
    %c0_2 = arith.constant 0 : index
    %1 = vector.load %arg1[%c0_1, %c0_2] : memref<232x128xf32, #tpu.memory_space<vmem>>, vector<96x32xf32>
    %2 = vector.shape_cast %1 : vector<96x32xf32> to vector<12x8x32xf32>
    %c96 = arith.constant 96 : index
    %c0_3 = arith.constant 0 : index
    %3 = vector.load %arg1[%c96, %c0_3] : memref<232x128xf32, #tpu.memory_space<vmem>>, vector<32x32xf32>
    %4 = vector.shape_cast %3 : vector<32x32xf32> to vector<4x8x32xf32>
    %c128 = arith.constant 128 : index
    %c0_4 = arith.constant 0 : index
    %5 = vector.load %arg1[%c128, %c0_4] : memref<232x128xf32, #tpu.memory_space<vmem>>, vector<32x64xf32>
    %c160 = arith.constant 160 : index
    %c0_5 = arith.constant 0 : index
    %6 = vector.load %arg1[%c160, %c0_5] : memref<232x128xf32, #tpu.memory_space<vmem>>, vector<64x32xf32>
    %c224 = arith.constant 224 : index
    %c0_6 = arith.constant 0 : index
    %7 = vector.load %arg1[%c224, %c0_6] : memref<232x128xf32, #tpu.memory_space<vmem>>, vector<8x128xf32>
    %8 = vector.extract_strided_slice %7 {offsets = [0, 0], sizes = [1, 32], strides = [1, 1]} : vector<8x128xf32> to vector<1x32xf32>
    %9 = vector.extract_strided_slice %7 {offsets = [1, 0], sizes = [1, 32], strides = [1, 1]} : vector<8x128xf32> to vector<1x32xf32>
    %10 = vector.extract_strided_slice %7 {offsets = [2, 0], sizes = [1, 32], strides = [1, 1]} : vector<8x128xf32> to vector<1x32xf32>
    %11 = vector.extract_strided_slice %7 {offsets = [3, 0], sizes = [1, 32], strides = [1, 1]} : vector<8x128xf32> to vector<1x32xf32>
    %12 = vector.extract_strided_slice %7 {offsets = [4, 0], sizes = [1, 32], strides = [1, 1]} : vector<8x128xf32> to vector<1x32xf32>
    %13 = vector.extract_strided_slice %7 {offsets = [5, 0], sizes = [1, 32], strides = [1, 1]} : vector<8x128xf32> to vector<1x32xf32>
    %14 = vector.extract_strided_slice %7 {offsets = [6, 0], sizes = [1, 64], strides = [1, 1]} : vector<8x128xf32> to vector<1x64xf32>
    %15 = vector.shape_cast %0 : vector<16x32xf32> to vector<1x16x32xf32>
    %16 = vector.broadcast %15 : vector<1x16x32xf32> to vector<12x16x32xf32>
    "tpu.trace_start"() <{level = 10 : i32, message = "ate,ake->atk"}> : () -> ()
    %cst = arith.constant dense<0.000000e+00> : vector<12x16x8xf32>
    %17 = tpu.matmul %16, %2, %cst {dimension_numbers = #tpu.dot_dimension_numbers<[2], [2], [1], [1], [0, 0, 0, 1, 1, 1], [0], [0]>} : vector<12x16x32xf32>, vector<12x8x32xf32>, vector<12x16x8xf32> -> vector<12x16x8xf32>
    "tpu.trace_stop"() : () -> ()
    %18 = vector.shape_cast %17 : vector<12x16x8xf32> to vector<24x8x8xf32>
    %19 = vector.extract_strided_slice %18 {offsets = [0, 0, 0], sizes = [8, 8, 8], strides = [1, 1, 1]} : vector<24x8x8xf32> to vector<8x8x8xf32>
    %20 = vector.extract_strided_slice %18 {offsets = [8, 0, 0], sizes = [8, 8, 8], strides = [1, 1, 1]} : vector<24x8x8xf32> to vector<8x8x8xf32>
    %21 = vector.extract_strided_slice %18 {offsets = [16, 0, 0], sizes = [8, 8, 8], strides = [1, 1, 1]} : vector<24x8x8xf32> to vector<8x8x8xf32>
    "tpu.trace_start"() <{level = 10 : i32, message = "ank,amk->anm"}> : () -> ()
    %cst_7 = arith.constant dense<0.000000e+00> : vector<8x8x8xf32>
    %22 = tpu.matmul %19, %20, %cst_7 {dimension_numbers = #tpu.dot_dimension_numbers<[2], [2], [1], [1], [0, 0, 0, 1, 1, 1], [0], [0]>} : vector<8x8x8xf32>, vector<8x8x8xf32>, vector<8x8x8xf32> -> vector<8x8x8xf32>
    "tpu.trace_stop"() : () -> ()
    %cst_8 = arith.constant dense<0xFF800000> : vector<8x8xf32>
    %23 = vector.multi_reduction <maximumf>, %22, %cst_8 [2] : vector<8x8x8xf32> to vector<8x8xf32>
    %24 = vector.shape_cast %23 : vector<8x8xf32> to vector<8x8x1xf32>
    %25 = vector.broadcast %24 : vector<8x8x1xf32> to vector<8x8x8xf32>
    %26 = arith.subf %22, %25 : vector<8x8x8xf32>
    %27 = math.exp %26 : vector<8x8x8xf32>
    %cst_9 = arith.constant dense<0.000000e+00> : vector<8x8xf32>
    %28 = vector.multi_reduction <add>, %27, %cst_9 [2] : vector<8x8x8xf32> to vector<8x8xf32>
    %29 = vector.shape_cast %28 : vector<8x8xf32> to vector<8x8x1xf32>
    "tpu.trace_start"() <{level = 10 : i32, message = "anm,amk->ank"}> : () -> ()
    %cst_10 = arith.constant dense<0.000000e+00> : vector<8x8x8xf32>
    %30 = tpu.matmul %27, %21, %cst_10 {dimension_numbers = #tpu.dot_dimension_numbers<[2], [1], [1], [2], [0, 0, 0, 1, 1, 2], [0], [0]>} : vector<8x8x8xf32>, vector<8x8x8xf32>, vector<8x8x8xf32> -> vector<8x8x8xf32>
    "tpu.trace_stop"() : () -> ()
    %31 = vector.broadcast %29 : vector<8x8x1xf32> to vector<8x8x8xf32>
    %32 = arith.divf %30, %31 : vector<8x8x8xf32>
    %33 = vector.shape_cast %32 : vector<8x8x8xf32> to vector<4x16x8xf32>
    "tpu.trace_start"() <{level = 10 : i32, message = "htk,hke->hte"}> : () -> ()
    %cst_11 = arith.constant dense<0.000000e+00> : vector<4x16x32xf32>
    %34 = tpu.matmul %33, %4, %cst_11 {dimension_numbers = #tpu.dot_dimension_numbers<[2], [1], [1], [2], [0, 0, 0, 1, 1, 2], [0], [0]>} : vector<4x16x8xf32>, vector<4x8x32xf32>, vector<4x16x32xf32> -> vector<4x16x32xf32>
    "tpu.trace_stop"() : () -> ()
    %cst_12 = arith.constant dense<0.000000e+00> : vector<16x32xf32>
    %35 = vector.multi_reduction <add>, %34, %cst_12 [0] : vector<4x16x32xf32> to vector<16x32xf32>
    %36 = vector.broadcast %8 : vector<1x32xf32> to vector<16x32xf32>
    %37 = arith.addf %35, %36 : vector<16x32xf32>
    %38 = arith.addf %0, %37 : vector<16x32xf32>
    %cst_13 = arith.constant dense<0.000000e+00> : vector<32xf32>
    %39 = vector.multi_reduction <add>, %38, %cst_13 [0] : vector<16x32xf32> to vector<32xf32>
    %40 = vector.shape_cast %39 : vector<32xf32> to vector<1x32xf32>
    %cst_14 = arith.constant 1.600000e+01 : f32
    %41 = vector.broadcast %cst_14 : f32 to vector<1x32xf32>
    %42 = arith.divf %40, %41 : vector<1x32xf32>
    %43 = vector.broadcast %42 : vector<1x32xf32> to vector<16x32xf32>
    %44 = arith.subf %38, %43 : vector<16x32xf32>
    %45 = arith.mulf %44, %44 : vector<16x32xf32>
    %cst_15 = arith.constant dense<0.000000e+00> : vector<32xf32>
    %46 = vector.multi_reduction <add>, %45, %cst_15 [0] : vector<16x32xf32> to vector<32xf32>
    %47 = vector.shape_cast %46 : vector<32xf32> to vector<1x32xf32>
    %cst_16 = arith.constant 1.600000e+01 : f32
    %48 = vector.broadcast %cst_16 : f32 to vector<1x32xf32>
    %49 = arith.divf %47, %48 : vector<1x32xf32>
    %50 = vector.broadcast %42 : vector<1x32xf32> to vector<16x32xf32>
    %51 = arith.subf %38, %50 : vector<16x32xf32>
    %cst_17 = arith.constant 9.99999974E-6 : f32
    %52 = vector.broadcast %cst_17 : f32 to vector<1x32xf32>
    %53 = arith.addf %49, %52 : vector<1x32xf32>
    %54 = math.rsqrt %53 : vector<1x32xf32>
    %55 = vector.broadcast %54 : vector<1x32xf32> to vector<16x32xf32>
    %56 = arith.mulf %51, %55 : vector<16x32xf32>
    %57 = vector.broadcast %9 : vector<1x32xf32> to vector<16x32xf32>
    %58 = arith.mulf %56, %57 : vector<16x32xf32>
    %59 = vector.broadcast %10 : vector<1x32xf32> to vector<16x32xf32>
    %60 = arith.addf %58, %59 : vector<16x32xf32>
    %cst_18 = arith.constant dense<0.000000e+00> : vector<16x64xf32>
    %61 = tpu.matmul %60, %5, %cst_18 {dimension_numbers = #tpu.dot_dimension_numbers<[1], [0], [0], [1], [0, 0, 1, 1], [], []>} : vector<16x32xf32>, vector<32x64xf32>, vector<16x64xf32> -> vector<16x64xf32>
    %62 = vector.broadcast %14 : vector<1x64xf32> to vector<16x64xf32>
    %63 = arith.addf %61, %62 : vector<16x64xf32>
    %cst_19 = arith.constant 0.000000e+00 : f32
    %64 = vector.broadcast %cst_19 : f32 to vector<16x64xf32>
    %65 = arith.maximumf %63, %64 : vector<16x64xf32>
    %cst_20 = arith.constant dense<0.000000e+00> : vector<16x32xf32>
    %66 = tpu.matmul %65, %6, %cst_20 {dimension_numbers = #tpu.dot_dimension_numbers<[1], [0], [0], [1], [0, 0, 1, 1], [], []>} : vector<16x64xf32>, vector<64x32xf32>, vector<16x32xf32> -> vector<16x32xf32>
    %67 = vector.broadcast %11 : vector<1x32xf32> to vector<16x32xf32>
    %68 = arith.addf %66, %67 : vector<16x32xf32>
    %69 = arith.addf %60, %68 : vector<16x32xf32>
    %cst_21 = arith.constant dense<0.000000e+00> : vector<32xf32>
    %70 = vector.multi_reduction <add>, %69, %cst_21 [0] : vector<16x32xf32> to vector<32xf32>
    %71 = vector.shape_cast %70 : vector<32xf32> to vector<1x32xf32>
    %cst_22 = arith.constant 1.600000e+01 : f32
    %72 = vector.broadcast %cst_22 : f32 to vector<1x32xf32>
    %73 = arith.divf %71, %72 : vector<1x32xf32>
    %74 = vector.broadcast %73 : vector<1x32xf32> to vector<16x32xf32>
    %75 = arith.subf %69, %74 : vector<16x32xf32>
    %76 = arith.mulf %75, %75 : vector<16x32xf32>
    %cst_23 = arith.constant dense<0.000000e+00> : vector<32xf32>
    %77 = vector.multi_reduction <add>, %76, %cst_23 [0] : vector<16x32xf32> to vector<32xf32>
    %78 = vector.shape_cast %77 : vector<32xf32> to vector<1x32xf32>
    %cst_24 = arith.constant 1.600000e+01 : f32
    %79 = vector.broadcast %cst_24 : f32 to vector<1x32xf32>
    %80 = arith.divf %78, %79 : vector<1x32xf32>
    %81 = vector.broadcast %73 : vector<1x32xf32> to vector<16x32xf32>
    %82 = arith.subf %69, %81 : vector<16x32xf32>
    %cst_25 = arith.constant 9.99999974E-6 : f32
    %83 = vector.broadcast %cst_25 : f32 to vector<1x32xf32>
    %84 = arith.addf %80, %83 : vector<1x32xf32>
    %85 = math.rsqrt %84 : vector<1x32xf32>
    %86 = vector.broadcast %85 : vector<1x32xf32> to vector<16x32xf32>
    %87 = arith.mulf %82, %86 : vector<16x32xf32>
    %88 = vector.broadcast %12 : vector<1x32xf32> to vector<16x32xf32>
    %89 = arith.mulf %87, %88 : vector<16x32xf32>
    %90 = vector.broadcast %13 : vector<1x32xf32> to vector<16x32xf32>
    %91 = arith.addf %89, %90 : vector<16x32xf32>
    %c0_26 = arith.constant 0 : index
    %c0_27 = arith.constant 0 : index
    %92 = vector.load %arg2[%c0_26, %c0_27] : memref<16x32xf32, #tpu.memory_space<vmem>>, vector<16x32xf32>
    tpu.vector_store %arg2[%c0_26, %c0_27], %91 {strides = array<i32>} : memref<16x32xf32, #tpu.memory_space<vmem>>, vector<16x32xf32>,
    return
  }
}

</mosaic_0001>

<llo_original>
// kernel: tpu_custom_call.1
$region0: #{tpu_custom_call.1}
  #allocation0 [shape = 'u32[]', space=smem, size = 0x4, offset = 0x4, fixed_abs, tag = 'smem constant byte address 0x4 - core index']
  #allocation1 [shape = 'u32[72,128]{1,0:T(1,128)}', space=vmem, size = 0x9000, scoped, tag = 'internal scratch']
  %s0 = inlined_call_operand.hbm [shape: f32[16,32], index: 0, kind: input, shape index: {}]
  %s1 = inlined_call_operand.hbm [shape: f32[232,128], index: 1, kind: input, shape index: {}]
  %s2 = inlined_call_operand.hbm [shape: f32[16,32], index: 2, kind: output, shape index: {}]
  %s3 = sld [smem:[#allocation0]]
  $region26: #{tpu_custom_call.1} parent=0
    _
  %s5 = ssub.s32 1, %s3
  %s6 = scalar_select 0, %s5, %s3
  $region1: #{tpu_custom_call.1} parent=0
    #allocation2 [shape = 'u8[8192]{0}', space=vmem, size = 0x2000, scoped, tag = 'input window, operand 0, single buffered']
    #allocation3 [shape = 's32[1]{0}', space=sflag, size = 0x4, scoped, tag = 'scoped memory for tpu_custom_call.1']
    #allocation4 [shape = 's32[1]{0}', space=sflag, size = 0x4, scoped, tag = 'scoped memory for tpu_custom_call.1']
    #allocation5 [shape = 'u8[118784]{0}', space=vmem, size = 0x1d000, scoped, tag = 'input window, operand 1, single buffered']
    #allocation6 [shape = 's32[1]{0}', space=sflag, size = 0x4, scoped, tag = 'scoped memory for tpu_custom_call.1']
    #allocation7 [shape = 'u8[8192]{0}', space=vmem, size = 0x2000, scoped, tag = 'output window, operand 0, single buffered']
    %7 = vsyncpa [#allocation3], 0
    %8 = vsyncpa [#allocation6], 0
    %9 = vsyncpa [#allocation4], 0
    // Predicated region
    $region2: #{tpu_custom_call.1} parent=1 // pred_check
      _
    $region3: #{tpu_custom_call.1} parent=1 // pred_check_branch
      %11 = sbr.rel (0) target = $region5
    $region4: #{tpu_custom_call.1} parent=1 // pred_region
      %13 = vsyncadd [#allocation3], 0
      %s14 = sshll.u32 %s0, 4
      %s15 = int_to_ptr.hbm [resolvable:$true] %s14
      %s16 = sshll.u32 [#allocation2], 4
      %s17 = int_to_ptr.vmem [resolvable:$true] %s16
      %22 = dma.hbm_to_vmem [thread:$0]  %s15, 256, %s17, [#allocation3], 128, 128, 8
    $region5: #{tpu_custom_call.1} parent=1 // pred_fallthru
      _
    // Predicated region
    $region6: #{tpu_custom_call.1} parent=1 // pred_check
      _
    $region7: #{tpu_custom_call.1} parent=1 // pred_check_branch
      %24 = sbr.rel (0) target = $region9
    $region8: #{tpu_custom_call.1} parent=1 // pred_region
      %26 = vsyncadd [#allocation6], 0
      %s27 = sshll.u32 %s1, 4
      %s28 = int_to_ptr.hbm [resolvable:$true] %s27
      %s29 = sshll.u32 [#allocation5], 4
      %s30 = int_to_ptr.vmem [resolvable:$true] %s29
      %35 = dma.hbm_to_vmem [thread:$0]  %s28, 3712, %s30, [#allocation6], 128, 128, 8
    $region9: #{tpu_custom_call.1} parent=1 // pred_fallthru
      _
    // Predicated region
    $region10: #{tpu_custom_call.1} parent=1 // pred_check
      _
    $region11: #{tpu_custom_call.1} parent=1 // pred_check_branch
      %37 = sbr.rel (0) target = $region13
    $region12: #{tpu_custom_call.1} parent=1 // pred_region
      %39 = dma.done [#allocation3], 256
    $region13: #{tpu_custom_call.1} parent=1 // pred_fallthru
      _
    // Predicated region
    $region14: #{tpu_custom_call.1} parent=1 // pred_check
      _
    $region15: #{tpu_custom_call.1} parent=1 // pred_check_branch
      %41 = sbr.rel (0) target = $region17
    $region16: #{tpu_custom_call.1} parent=1 // pred_region
      %43 = dma.done [#allocation6], 3712
    $region17: #{tpu_custom_call.1} parent=1 // pred_fallthru
      _
    %v44 = vld [vmem:[#allocation2] sm:$0xff]
    %v45 = vld [vmem:[#allocation2 + $0x8] sm:$0xff]
    %v46 = vld [vmem:[#allocation5] sm:$0xff]
    %v47 = vld [vmem:[#allocation5 + $0x8] sm:$0xff]
    %v48 = vld [vmem:[#allocation5 + $0x10] sm:$0xff]
    %v49 = vld [vmem:[#allocation5 + $0x18] sm:$0xff]
    %v50 = vld [vmem:[#allocation5 + $0x20] sm:$0xff]
    %v51 = vld [vmem:[#allocation5 + $0x28] sm:$0xff]
    %v52 = vld [vmem:[#allocation5 + $0x30] sm:$0xff]
    %v53 = vld [vmem:[#allocation5 + $0x38] sm:$0xff]
    %v54 = vld [vmem:[#allocation5 + $0x40] sm:$0xff]
    %v55 = vld [vmem:[#allocation5 + $0x48] sm:$0xff]
    %v56 = vld [vmem:[#allocation5 + $0x50] sm:$0xff]
    %v57 = vld [vmem:[#allocation5 + $0x58] sm:$0xff]
    %v58 = vld [vmem:[#allocation5 + $0x60] sm:$0xff]
    %v59 = vld [vmem:[#allocation5 + $0x68] sm:$0xff]
    %v60 = vld [vmem:[#allocation5 + $0x70] sm:$0xff]
    %v61 = vld [vmem:[#allocation5 + $0x78] sm:$0xff]
    %v62 = vld [vmem:[#allocation5 + $0x80] sm:$0xff]
    %v63 = vld [vmem:[#allocation5 + $0x88] sm:$0xff]
    %v64 = vld [vmem:[#allocation5 + $0x90] sm:$0xff]
    %v65 = vld [vmem:[#allocation5 + $0x98] sm:$0xff]
    %v66 = vld [vmem:[#allocation5 + $0xa0] sm:$0xff]
    %v67 = vld [vmem:[#allocation5 + $0xa8] sm:$0xff]
    %v68 = vld [vmem:[#allocation5 + $0xb0] sm:$0xff]
    %v69 = vld [vmem:[#allocation5 + $0xb8] sm:$0xff]
    %v70 = vld [vmem:[#allocation5 + $0xc0] sm:$0xff]
    %v71 = vld [vmem:[#allocation5 + $0xc8] sm:$0xff]
    %v72 = vld [vmem:[#allocation5 + $0xd0] sm:$0xff]
    %v73 = vld [vmem:[#allocation5 + $0xd8] sm:$0xff]
    %v74 = vld [vmem:[#allocation5 + $0xe0] sm:$0xff]
    %vm75 = vcmask 261120
    %v77 = vsel %vm75, %v44, 0
    %v80 = vsel %vm75, %v45, 0
    %v83 = vsel %vm75, %v46, 0
    %85 = vmatpush.xpose.msra.mxu0 0.0
    %86 = vmatpush.xpose.msra.mxu0 0.0
    %87 = vmatpush.xpose.msra.mxu0 0.0
    %88 = vmatpush.xpose.msra.mxu0 0.0
    %89 = vmatpush.xpose.msra.mxu0 0.0
    %90 = vmatpush.xpose.msra.mxu0 0.0
    %91 = vmatpush.xpose.msra.mxu0 0.0
    %92 = vmatpush.xpose.msra.mxu0 0.0
    %93 = vmatpush.xpose.msra.mxu0 0.0
    %94 = vmatpush.xpose.msra.mxu0 0.0
    %95 = vmatpush.xpose.msra.mxu0 0.0
    %96 = vmatpush.xpose.msra.mxu0 0.0
    %97 = vmatpush.xpose.msra.mxu0 0.0
    %98 = vmatpush.xpose.msra.mxu0 0.0
    %99 = vmatpush.xpose.msra.mxu0 0.0
    %100 = vmatpush.xpose.msra.mxu0 %v83
    %101 = vmatmul.f32.gmra.mxu0 %v77
    %v102 = vpop.f32.mrf.mxu0
    %v103 = vadd.f32 0.0, %v102
    %104 = vmatmul.f32.gmra.mxu0 %v80
    %v105 = vpop.f32.mrf.mxu0
    %v106 = vadd.f32 0.0, %v105
    %107 = vdwg.mxu0
    %v109 = vsel %vm75, %v47, 0
    %111 = vmatpush.xpose.msra.mxu0 0.0
    %112 = vmatpush.xpose.msra.mxu0 0.0
    %113 = vmatpush.xpose.msra.mxu0 0.0
    %114 = vmatpush.xpose.msra.mxu0 0.0
    %115 = vmatpush.xpose.msra.mxu0 0.0
    %116 = vmatpush.xpose.msra.mxu0 0.0
    %117 = vmatpush.xpose.msra.mxu0 0.0
    %118 = vmatpush.xpose.msra.mxu0 0.0
    %119 = vmatpush.xpose.msra.mxu0 0.0
    %120 = vmatpush.xpose.msra.mxu0 0.0
    %121 = vmatpush.xpose.msra.mxu0 0.0
    %122 = vmatpush.xpose.msra.mxu0 0.0
    %123 = vmatpush.xpose.msra.mxu0 0.0
    %124 = vmatpush.xpose.msra.mxu0 0.0
    %125 = vmatpush.xpose.msra.mxu0 0.0
    %126 = vmatpush.xpose.msra.mxu0 %v109
    %127 = vmatmul.f32.gmra.mxu0 %v77
    %v128 = vpop.f32.mrf.mxu0
    %v129 = vadd.f32 0.0, %v128
    %130 = vmatmul.f32.gmra.mxu0 %v80
    %v131 = vpop.f32.mrf.mxu0
    %v132 = vadd.f32 0.0, %v131
    %133 = vdwg.mxu0
    %v135 = vsel %vm75, %v48, 0
    %137 = vmatpush.xpose.msra.mxu0 0.0
    %138 = vmatpush.xpose.msra.mxu0 0.0
    %139 = vmatpush.xpose.msra.mxu0 0.0
    %140 = vmatpush.xpose.msra.mxu0 0.0
    %141 = vmatpush.xpose.msra.mxu0 0.0
    %142 = vmatpush.xpose.msra.mxu0 0.0
    %143 = vmatpush.xpose.msra.mxu0 0.0
    %144 = vmatpush.xpose.msra.mxu0 0.0
    %145 = vmatpush.xpose.msra.mxu0 0.0
    %146 = vmatpush.xpose.msra.mxu0 0.0
    %147 = vmatpush.xpose.msra.mxu0 0.0
    %148 = vmatpush.xpose.msra.mxu0 0.0
    %149 = vmatpush.xpose.msra.mxu0 0.0
    %150 = vmatpush.xpose.msra.mxu0 0.0
    %151 = vmatpush.xpose.msra.mxu0 0.0
    %152 = vmatpush.xpose.msra.mxu0 %v135
    %153 = vmatmul.f32.gmra.mxu0 %v77
    %v154 = vpop.f32.mrf.mxu0
    %v155 = vadd.f32 0.0, %v154
    %156 = vmatmul.f32.gmra.mxu0 %v80
    %v157 = vpop.f32.mrf.mxu0
    %v158 = vadd.f32 0.0, %v157
    %159 = vdwg.mxu0
    %v161 = vsel %vm75, %v49, 0
    %163 = vmatpush.xpose.msra.mxu0 0.0
    %164 = vmatpush.xpose.msra.mxu0 0.0
    %165 = vmatpush.xpose.msra.mxu0 0.0
    %166 = vmatpush.xpose.msra.mxu0 0.0
    %167 = vmatpush.xpose.msra.mxu0 0.0
    %168 = vmatpush.xpose.msra.mxu0 0.0
    %169 = vmatpush.xpose.msra.mxu0 0.0
    %170 = vmatpush.xpose.msra.mxu0 0.0
    %171 = vmatpush.xpose.msra.mxu0 0.0
    %172 = vmatpush.xpose.msra.mxu0 0.0
    %173 = vmatpush.xpose.msra.mxu0 0.0
    %174 = vmatpush.xpose.msra.mxu0 0.0
    %175 = vmatpush.xpose.msra.mxu0 0.0
    %176 = vmatpush.xpose.msra.mxu0 0.0
    %177 = vmatpush.xpose.msra.mxu0 0.0
    %178 = vmatpush.xpose.msra.mxu0 %v161
    %179 = vmatmul.f32.gmra.mxu0 %v77
    %v180 = vpop.f32.mrf.mxu0
    %v181 = vadd.f32 0.0, %v180
    %182 = vmatmul.f32.gmra.mxu0 %v80
    %v183 = vpop.f32.mrf.mxu0
    %v184 = vadd.f32 0.0, %v183
    %185 = vdwg.mxu0
    %v187 = vsel %vm75, %v50, 0
    %189 = vmatpush.xpose.msra.mxu0 0.0
    %190 = vmatpush.xpose.msra.mxu0 0.0
    %191 = vmatpush.xpose.msra.mxu0 0.0
    %192 = vmatpush.xpose.msra.mxu0 0.0
    %193 = vmatpush.xpose.msra.mxu0 0.0
    %194 = vmatpush.xpose.msra.mxu0 0.0
    %195 = vmatpush.xpose.msra.mxu0 0.0
    %196 = vmatpush.xpose.msra.mxu0 0.0
    %197 = vmatpush.xpose.msra.mxu0 0.0
    %198 = vmatpush.xpose.msra.mxu0 0.0
    %199 = vmatpush.xpose.msra.mxu0 0.0
    %200 = vmatpush.xpose.msra.mxu0 0.0
    %201 = vmatpush.xpose.msra.mxu0 0.0
    %202 = vmatpush.xpose.msra.mxu0 0.0
    %203 = vmatpush.xpose.msra.mxu0 0.0
    %204 = vmatpush.xpose.msra.mxu0 %v187
    %205 = vmatmul.f32.gmra.mxu0 %v77
    %v206 = vpop.f32.mrf.mxu0
    %v207 = vadd.f32 0.0, %v206
    %208 = vmatmul.f32.gmra.mxu0 %v80
    %v209 = vpop.f32.mrf.mxu0
    %v210 = vadd.f32 0.0, %v209
    %211 = vdwg.mxu0
    %v213 = vsel %vm75, %v51, 0
    %215 = vmatpush.xpose.msra.mxu0 0.0
    %216 = vmatpush.xpose.msra.mxu0 0.0
    %217 = vmatpush.xpose.msra.mxu0 0.0
    %218 = vmatpush.xpose.msra.mxu0 0.0
    %219 = vmatpush.xpose.msra.mxu0 0.0
    %220 = vmatpush.xpose.msra.mxu0 0.0
    %221 = vmatpush.xpose.msra.mxu0 0.0
    %222 = vmatpush.xpose.msra.mxu0 0.0
    %223 = vmatpush.xpose.msra.mxu0 0.0
    %224 = vmatpush.xpose.msra.mxu0 0.0
    %225 = vmatpush.xpose.msra.mxu0 0.0
    %226 = vmatpush.xpose.msra.mxu0 0.0
    %227 = vmatpush.xpose.msra.mxu0 0.0
    %228 = vmatpush.xpose.msra.mxu0 0.0
    %229 = vmatpush.xpose.msra.mxu0 0.0
    %230 = vmatpush.xpose.msra.mxu0 %v213
    %231 = vmatmul.f32.gmra.mxu0 %v77
    %v232 = vpop.f32.mrf.mxu0
    %v233 = vadd.f32 0.0, %v232
    %234 = vmatmul.f32.gmra.mxu0 %v80
    %v235 = vpop.f32.mrf.mxu0
    %v236 = vadd.f32 0.0, %v235
    %237 = vdwg.mxu0
    %v239 = vsel %vm75, %v52, 0
    %241 = vmatpush.xpose.msra.mxu0 0.0
    %242 = vmatpush.xpose.msra.mxu0 0.0
    %243 = vmatpush.xpose.msra.mxu0 0.0
    %244 = vmatpush.xpose.msra.mxu0 0.0
    %245 = vmatpush.xpose.msra.mxu0 0.0
    %246 = vmatpush.xpose.msra.mxu0 0.0
    %247 = vmatpush.xpose.msra.mxu0 0.0
    %248 = vmatpush.xpose.msra.mxu0 0.0
    %249 = vmatpush.xpose.msra.mxu0 0.0
    %250 = vmatpush.xpose.msra.mxu0 0.0
    %251 = vmatpush.xpose.msra.mxu0 0.0
    %252 = vmatpush.xpose.msra.mxu0 0.0
    %253 = vmatpush.xpose.msra.mxu0 0.0
    %254 = vmatpush.xpose.msra.mxu0 0.0
    %255 = vmatpush.xpose.msra.mxu0 0.0
    %256 = vmatpush.xpose.msra.mxu0 %v239
    %257 = vmatmul.f32.gmra.mxu0 %v77
    %v258 = vpop.f32.mrf.mxu0
    %v259 = vadd.f32 0.0, %v258
    %260 = vmatmul.f32.gmra.mxu0 %v80
    %v261 = vpop.f32.mrf.mxu0
    %v262 = vadd.f32 0.0, %v261
    %263 = vdwg.mxu0
    %v265 = vsel %vm75, %v53, 0
    %267 = vmatpush.xpose.msra.mxu0 0.0
    %268 = vmatpush.xpose.msra.mxu0 0.0
    %269 = vmatpush.xpose.msra.mxu0 0.0
    %270 = vmatpush.xpose.msra.mxu0 0.0
    %271 = vmatpush.xpose.msra.mxu0 0.0
    %272 = vmatpush.xpose.msra.mxu0 0.0
    %273 = vmatpush.xpose.msra.mxu0 0.0
    %274 = vmatpush.xpose.msra.mxu0 0.0
    %275 = vmatpush.xpose.msra.mxu0 0.0
    %276 = vmatpush.xpose.msra.mxu0 0.0
    %277 = vmatpush.xpose.msra.mxu0 0.0
    %278 = vmatpush.xpose.msra.mxu0 0.0
    %279 = vmatpush.xpose.msra.mxu0 0.0
    %280 = vmatpush.xpose.msra.mxu0 0.0
    %281 = vmatpush.xpose.msra.mxu0 0.0
    %282 = vmatpush.xpose.msra.mxu0 %v265
    %283 = vmatmul.f32.gmra.mxu0 %v77
    %v284 = vpop.f32.mrf.mxu0
    %v285 = vadd.f32 0.0, %v284
    %286 = vmatmul.f32.gmra.mxu0 %v80
    %v287 = vpop.f32.mrf.mxu0
    %v288 = vadd.f32 0.0, %v287
    %289 = vdwg.mxu0
    %v291 = vsel %vm75, %v54, 0
    %293 = vmatpush.xpose.msra.mxu0 0.0
    %294 = vmatpush.xpose.msra.mxu0 0.0
    %295 = vmatpush.xpose.msra.mxu0 0.0
    %296 = vmatpush.xpose.msra.mxu0 0.0
    %297 = vmatpush.xpose.msra.mxu0 0.0
    %298 = vmatpush.xpose.msra.mxu0 0.0
    %299 = vmatpush.xpose.msra.mxu0 0.0
    %300 = vmatpush.xpose.msra.mxu0 0.0
    %301 = vmatpush.xpose.msra.mxu0 0.0
    %302 = vmatpush.xpose.msra.mxu0 0.0
    %303 = vmatpush.xpose.msra.mxu0 0.0
    %304 = vmatpush.xpose.msra.mxu0 0.0
    %305 = vmatpush.xpose.msra.mxu0 0.0
    %306 = vmatpush.xpose.msra.mxu0 0.0
    %307 = vmatpush.xpose.msra.mxu0 0.0
    %308 = vmatpush.xpose.msra.mxu0 %v291
    %309 = vmatmul.f32.gmra.mxu0 %v77
    %v310 = vpop.f32.mrf.mxu0
    %v311 = vadd.f32 0.0, %v310
    %312 = vmatmul.f32.gmra.mxu0 %v80
    %v313 = vpop.f32.mrf.mxu0
    %v314 = vadd.f32 0.0, %v313
    %315 = vdwg.mxu0
    %v317 = vsel %vm75, %v55, 0
    %319 = vmatpush.xpose.msra.mxu0 0.0
    %320 = vmatpush.xpose.msra.mxu0 0.0
    %321 = vmatpush.xpose.msra.mxu0 0.0
    %322 = vmatpush.xpose.msra.mxu0 0.0
    %323 = vmatpush.xpose.msra.mxu0 0.0
    %324 = vmatpush.xpose.msra.mxu0 0.0
    %325 = vmatpush.xpose.msra.mxu0 0.0
    %326 = vmatpush.xpose.msra.mxu0 0.0
    %327 = vmatpush.xpose.msra.mxu0 0.0
    %328 = vmatpush.xpose.msra.mxu0 0.0
    %329 = vmatpush.xpose.msra.mxu0 0.0
    %330 = vmatpush.xpose.msra.mxu0 0.0
    %331 = vmatpush.xpose.msra.mxu0 0.0
    %332 = vmatpush.xpose.msra.mxu0 0.0
    %333 = vmatpush.xpose.msra.mxu0 0.0
    %334 = vmatpush.xpose.msra.mxu0 %v317
    %335 = vmatmul.f32.gmra.mxu0 %v77
    %v336 = vpop.f32.mrf.mxu0
    %v337 = vadd.f32 0.0, %v336
    %338 = vmatmul.f32.gmra.mxu0 %v80
    %v339 = vpop.f32.mrf.mxu0
    %v340 = vadd.f32 0.0, %v339
    %341 = vdwg.mxu0
    %v343 = vsel %vm75, %v56, 0
    %345 = vmatpush.xpose.msra.mxu0 0.0
    %346 = vmatpush.xpose.msra.mxu0 0.0
    %347 = vmatpush.xpose.msra.mxu0 0.0
    %348 = vmatpush.xpose.msra.mxu0 0.0
    %349 = vmatpush.xpose.msra.mxu0 0.0
    %350 = vmatpush.xpose.msra.mxu0 0.0
    %351 = vmatpush.xpose.msra.mxu0 0.0
    %352 = vmatpush.xpose.msra.mxu0 0.0
    %353 = vmatpush.xpose.msra.mxu0 0.0
    %354 = vmatpush.xpose.msra.mxu0 0.0
    %355 = vmatpush.xpose.msra.mxu0 0.0
    %356 = vmatpush.xpose.msra.mxu0 0.0
    %357 = vmatpush.xpose.msra.mxu0 0.0
    %358 = vmatpush.xpose.msra.mxu0 0.0
    %359 = vmatpush.xpose.msra.mxu0 0.0
    %360 = vmatpush.xpose.msra.mxu0 %v343
    %361 = vmatmul.f32.gmra.mxu0 %v77
    %v362 = vpop.f32.mrf.mxu0
    %v363 = vadd.f32 0.0, %v362
    %364 = vmatmul.f32.gmra.mxu0 %v80
    %v365 = vpop.f32.mrf.mxu0
    %v366 = vadd.f32 0.0, %v365
    %367 = vdwg.mxu0
    %v369 = vsel %vm75, %v57, 0
    %371 = vmatpush.xpose.msra.mxu0 0.0
    %372 = vmatpush.xpose.msra.mxu0 0.0
    %373 = vmatpush.xpose.msra.mxu0 0.0
    %374 = vmatpush.xpose.msra.mxu0 0.0
    %375 = vmatpush.xpose.msra.mxu0 0.0
    %376 = vmatpush.xpose.msra.mxu0 0.0
    %377 = vmatpush.xpose.msra.mxu0 0.0
    %378 = vmatpush.xpose.msra.mxu0 0.0
    %379 = vmatpush.xpose.msra.mxu0 0.0
    %380 = vmatpush.xpose.msra.mxu0 0.0
    %381 = vmatpush.xpose.msra.mxu0 0.0
    %382 = vmatpush.xpose.msra.mxu0 0.0
    %383 = vmatpush.xpose.msra.mxu0 0.0
    %384 = vmatpush.xpose.msra.mxu0 0.0
    %385 = vmatpush.xpose.msra.mxu0 0.0
    %386 = vmatpush.xpose.msra.mxu0 %v369
    %387 = vmatmul.f32.gmra.mxu0 %v77
    %v388 = vpop.f32.mrf.mxu0
    %v389 = vadd.f32 0.0, %v388
    %390 = vmatmul.f32.gmra.mxu0 %v80
    %v391 = vpop.f32.mrf.mxu0
    %v392 = vadd.f32 0.0, %v391
    %393 = vdwg.mxu0
    %vm394 = vcmask 64512
    %v396 = vsel %vm394, %v103, 0
    %v399 = vsel %vm394, %v207, 0
    %401 = vmatpush.xpose.msra.mxu0 0.0
    %402 = vmatpush.xpose.msra.mxu0 0.0
    %403 = vmatpush.xpose.msra.mxu0 0.0
    %404 = vmatpush.xpose.msra.mxu0 0.0
    %405 = vmatpush.xpose.msra.mxu0 0.0
    %406 = vmatpush.xpose.msra.mxu0 0.0
    %407 = vmatpush.xpose.msra.mxu0 0.0
    %408 = vmatpush.xpose.msra.mxu0 0.0
    %409 = vmatpush.xpose.msra.mxu0 0.0
    %410 = vmatpush.xpose.msra.mxu0 0.0
    %411 = vmatpush.xpose.msra.mxu0 0.0
    %412 = vmatpush.xpose.msra.mxu0 0.0
    %413 = vmatpush.xpose.msra.mxu0 0.0
    %414 = vmatpush.xpose.msra.mxu0 0.0
    %415 = vmatpush.xpose.msra.mxu0 0.0
    %416 = vmatpush.xpose.msra.mxu0 %v399
    %417 = vmatmul.f32.gmra.mxu0 %v396
    %v418 = vpop.f32.mrf.mxu0
    %v419 = vadd.f32 0.0, %v418
    %420 = vdwg.mxu0
    %v422 = vsel %vm394, %v106, 0
    %v425 = vsel %vm394, %v210, 0
    %427 = vmatpush.xpose.msra.mxu0 0.0
    %428 = vmatpush.xpose.msra.mxu0 0.0
    %429 = vmatpush.xpose.msra.mxu0 0.0
    %430 = vmatpush.xpose.msra.mxu0 0.0
    %431 = vmatpush.xpose.msra.mxu0 0.0
    %432 = vmatpush.xpose.msra.mxu0 0.0
    %433 = vmatpush.xpose.msra.mxu0 0.0
    %434 = vmatpush.xpose.msra.mxu0 0.0
    %435 = vmatpush.xpose.msra.mxu0 0.0
    %436 = vmatpush.xpose.msra.mxu0 0.0
    %437 = vmatpush.xpose.msra.mxu0 0.0
    %438 = vmatpush.xpose.msra.mxu0 0.0
    %439 = vmatpush.xpose.msra.mxu0 0.0
    %440 = vmatpush.xpose.msra.mxu0 0.0
    %441 = vmatpush.xpose.msra.mxu0 0.0
    %442 = vmatpush.xpose.msra.mxu0 %v425
    %443 = vmatmul.f32.gmra.mxu0 %v422
    %v444 = vpop.f32.mrf.mxu0
    %v445 = vadd.f32 0.0, %v444
    %446 = vdwg.mxu0
    %v448 = vsel %vm394, %v129, 0
    %v451 = vsel %vm394, %v233, 0
    %453 = vmatpush.xpose.msra.mxu0 0.0
    %454 = vmatpush.xpose.msra.mxu0 0.0
    %455 = vmatpush.xpose.msra.mxu0 0.0
    %456 = vmatpush.xpose.msra.mxu0 0.0
    %457 = vmatpush.xpose.msra.mxu0 0.0
    %458 = vmatpush.xpose.msra.mxu0 0.0
    %459 = vmatpush.xpose.msra.mxu0 0.0
    %460 = vmatpush.xpose.msra.mxu0 0.0
    %461 = vmatpush.xpose.msra.mxu0 0.0
    %462 = vmatpush.xpose.msra.mxu0 0.0
    %463 = vmatpush.xpose.msra.mxu0 0.0
    %464 = vmatpush.xpose.msra.mxu0 0.0
    %465 = vmatpush.xpose.msra.mxu0 0.0
    %466 = vmatpush.xpose.msra.mxu0 0.0
    %467 = vmatpush.xpose.msra.mxu0 0.0
    %468 = vmatpush.xpose.msra.mxu0 %v451
    %469 = vmatmul.f32.gmra.mxu0 %v448
    %v470 = vpop.f32.mrf.mxu0
    %v471 = vadd.f32 0.0, %v470
    %472 = vdwg.mxu0
    %v474 = vsel %vm394, %v132, 0
    %v477 = vsel %vm394, %v236, 0
    %479 = vmatpush.xpose.msra.mxu0 0.0
    %480 = vmatpush.xpose.msra.mxu0 0.0
    %481 = vmatpush.xpose.msra.mxu0 0.0
    %482 = vmatpush.xpose.msra.mxu0 0.0
    %483 = vmatpush.xpose.msra.mxu0 0.0
    %484 = vmatpush.xpose.msra.mxu0 0.0
    %485 = vmatpush.xpose.msra.mxu0 0.0
    %486 = vmatpush.xpose.msra.mxu0 0.0
    %487 = vmatpush.xpose.msra.mxu0 0.0
    %488 = vmatpush.xpose.msra.mxu0 0.0
    %489 = vmatpush.xpose.msra.mxu0 0.0
    %490 = vmatpush.xpose.msra.mxu0 0.0
    %491 = vmatpush.xpose.msra.mxu0 0.0
    %492 = vmatpush.xpose.msra.mxu0 0.0
    %493 = vmatpush.xpose.msra.mxu0 0.0
    %494 = vmatpush.xpose.msra.mxu0 %v477
    %495 = vmatmul.f32.gmra.mxu0 %v474
    %v496 = vpop.f32.mrf.mxu0
    %v497 = vadd.f32 0.0, %v496
    %498 = vdwg.mxu0
    %v500 = vsel %vm394, %v155, 0
    %v503 = vsel %vm394, %v259, 0
    %505 = vmatpush.xpose.msra.mxu0 0.0
    %506 = vmatpush.xpose.msra.mxu0 0.0
    %507 = vmatpush.xpose.msra.mxu0 0.0
    %508 = vmatpush.xpose.msra.mxu0 0.0
    %509 = vmatpush.xpose.msra.mxu0 0.0
    %510 = vmatpush.xpose.msra.mxu0 0.0
    %511 = vmatpush.xpose.msra.mxu0 0.0
    %512 = vmatpush.xpose.msra.mxu0 0.0
    %513 = vmatpush.xpose.msra.mxu0 0.0
    %514 = vmatpush.xpose.msra.mxu0 0.0
    %515 = vmatpush.xpose.msra.mxu0 0.0
    %516 = vmatpush.xpose.msra.mxu0 0.0
    %517 = vmatpush.xpose.msra.mxu0 0.0
    %518 = vmatpush.xpose.msra.mxu0 0.0
    %519 = vmatpush.xpose.msra.mxu0 0.0
    %520 = vmatpush.xpose.msra.mxu0 %v503
    %521 = vmatmul.f32.gmra.mxu0 %v500
    %v522 = vpop.f32.mrf.mxu0
    %v523 = vadd.f32 0.0, %v522
    %524 = vdwg.mxu0
    %v526 = vsel %vm394, %v158, 0
    %v529 = vsel %vm394, %v262, 0
    %531 = vmatpush.xpose.msra.mxu0 0.0
    %532 = vmatpush.xpose.msra.mxu0 0.0
    %533 = vmatpush.xpose.msra.mxu0 0.0
    %534 = vmatpush.xpose.msra.mxu0 0.0
    %535 = vmatpush.xpose.msra.mxu0 0.0
    %536 = vmatpush.xpose.msra.mxu0 0.0
    %537 = vmatpush.xpose.msra.mxu0 0.0
    %538 = vmatpush.xpose.msra.mxu0 0.0
    %539 = vmatpush.xpose.msra.mxu0 0.0
    %540 = vmatpush.xpose.msra.mxu0 0.0
    %541 = vmatpush.xpose.msra.mxu0 0.0
    %542 = vmatpush.xpose.msra.mxu0 0.0
    %543 = vmatpush.xpose.msra.mxu0 0.0
    %544 = vmatpush.xpose.msra.mxu0 0.0
    %545 = vmatpush.xpose.msra.mxu0 0.0
    %546 = vmatpush.xpose.msra.mxu0 %v529
    %547 = vmatmul.f32.gmra.mxu0 %v526
    %v548 = vpop.f32.mrf.mxu0
    %v549 = vadd.f32 0.0, %v548
    %550 = vdwg.mxu0
    %v552 = vsel %vm394, %v181, 0
    %v555 = vsel %vm394, %v285, 0
    %557 = vmatpush.xpose.msra.mxu0 0.0
    %558 = vmatpush.xpose.msra.mxu0 0.0
    %559 = vmatpush.xpose.msra.mxu0 0.0
    %560 = vmatpush.xpose.msra.mxu0 0.0
    %561 = vmatpush.xpose.msra.mxu0 0.0
    %562 = vmatpush.xpose.msra.mxu0 0.0
    %563 = vmatpush.xpose.msra.mxu0 0.0
    %564 = vmatpush.xpose.msra.mxu0 0.0
    %565 = vmatpush.xpose.msra.mxu0 0.0
    %566 = vmatpush.xpose.msra.mxu0 0.0
    %567 = vmatpush.xpose.msra.mxu0 0.0
    %568 = vmatpush.xpose.msra.mxu0 0.0
    %569 = vmatpush.xpose.msra.mxu0 0.0
    %570 = vmatpush.xpose.msra.mxu0 0.0
    %571 = vmatpush.xpose.msra.mxu0 0.0
    %572 = vmatpush.xpose.msra.mxu0 %v555
    %573 = vmatmul.f32.gmra.mxu0 %v552
    %v574 = vpop.f32.mrf.mxu0
    %v575 = vadd.f32 0.0, %v574
    %576 = vdwg.mxu0
    %v578 = vsel %vm394, %v184, 0
    %v581 = vsel %vm394, %v288, 0
    %583 = vmatpush.xpose.msra.mxu0 0.0
    %584 = vmatpush.xpose.msra.mxu0 0.0
    %585 = vmatpush.xpose.msra.mxu0 0.0
    %586 = vmatpush.xpose.msra.mxu0 0.0
    %587 = vmatpush.xpose.msra.mxu0 0.0
    %588 = vmatpush.xpose.msra.mxu0 0.0
    %589 = vmatpush.xpose.msra.mxu0 0.0
    %590 = vmatpush.xpose.msra.mxu0 0.0
    %591 = vmatpush.xpose.msra.mxu0 0.0
    %592 = vmatpush.xpose.msra.mxu0 0.0
    %593 = vmatpush.xpose.msra.mxu0 0.0
    %594 = vmatpush.xpose.msra.mxu0 0.0
    %595 = vmatpush.xpose.msra.mxu0 0.0
    %596 = vmatpush.xpose.msra.mxu0 0.0
    %597 = vmatpush.xpose.msra.mxu0 0.0
    %598 = vmatpush.xpose.msra.mxu0 %v581
    %599 = vmatmul.f32.gmra.mxu0 %v578
    %v600 = vpop.f32.mrf.mxu0
    %v601 = vadd.f32 0.0, %v600
    %602 = vdwg.mxu0
    %v603 = vsel %vm394, %v419, -inf
    %604 = vmax.xlane.f32.xlu0 %v603
    %v605 = vpop.xlane.xlu0 %604
    %v606 = vsel %vm394, %v445, -inf
    %607 = vmax.xlane.f32.xlu0 %v606
    %v608 = vpop.xlane.xlu0 %607
    %v609 = vsel %vm394, %v471, -inf
    %610 = vmax.xlane.f32.xlu0 %v609
    %v611 = vpop.xlane.xlu0 %610
    %v612 = vsel %vm394, %v497, -inf
    %613 = vmax.xlane.f32.xlu0 %v612
    %v614 = vpop.xlane.xlu0 %613
    %v615 = vsel %vm394, %v523, -inf
    %616 = vmax.xlane.f32.xlu0 %v615
    %v617 = vpop.xlane.xlu0 %616
    %v618 = vsel %vm394, %v549, -inf
    %619 = vmax.xlane.f32.xlu0 %v618
    %v620 = vpop.xlane.xlu0 %619
    %v621 = vsel %vm394, %v575, -inf
    %622 = vmax.xlane.f32.xlu0 %v621
    %v623 = vpop.xlane.xlu0 %622
    %v624 = vsel %vm394, %v601, -inf
    %625 = vmax.xlane.f32.xlu0 %v624
    %v626 = vpop.xlane.xlu0 %625
    %v627 = vsub.f32 %v419, %v605
    %v628 = vsub.f32 %v445, %v608
    %v629 = vsub.f32 %v471, %v611
    %v630 = vsub.f32 %v497, %v614
    %v631 = vsub.f32 %v523, %v617
    %v632 = vsub.f32 %v549, %v620
    %v633 = vsub.f32 %v575, %v623
    %v634 = vsub.f32 %v601, %v626
    %v635 = vmul.f32 %v627, 1.442695
    %v636 = vpow.pop %v635
    %v637 = vmul.f32 %v628, 1.442695
    %v638 = vpow.pop %v637
    %v639 = vmul.f32 %v629, 1.442695
    %v640 = vpow.pop %v639
    %v641 = vmul.f32 %v630, 1.442695
    %v642 = vpow.pop %v641
    %v643 = vmul.f32 %v631, 1.442695
    %v644 = vpow.pop %v643
    %v645 = vmul.f32 %v632, 1.442695
    %v646 = vpow.pop %v645
    %v647 = vmul.f32 %v633, 1.442695
    %v648 = vpow.pop %v647
    %v649 = vmul.f32 %v634, 1.442695
    %v650 = vpow.pop %v649
    %v651 = vsel %vm394, %v636, 0.0
    %652 = vadd.xlane.f32.xlu0 %v651
    %v653 = vpop.xlane.xlu0 %652
    %v654 = vsel %vm394, %v638, 0.0
    %655 = vadd.xlane.f32.xlu0 %v654
    %v656 = vpop.xlane.xlu0 %655
    %v657 = vsel %vm394, %v640, 0.0
    %658 = vadd.xlane.f32.xlu0 %v657
    %v659 = vpop.xlane.xlu0 %658
    %v660 = vsel %vm394, %v642, 0.0
    %661 = vadd.xlane.f32.xlu0 %v660
    %v662 = vpop.xlane.xlu0 %661
    %v663 = vsel %vm394, %v644, 0.0
    %664 = vadd.xlane.f32.xlu0 %v663
    %v665 = vpop.xlane.xlu0 %664
    %v666 = vsel %vm394, %v646, 0.0
    %667 = vadd.xlane.f32.xlu0 %v666
    %v668 = vpop.xlane.xlu0 %667
    %v669 = vsel %vm394, %v648, 0.0
    %670 = vadd.xlane.f32.xlu0 %v669
    %v671 = vpop.xlane.xlu0 %670
    %v672 = vsel %vm394, %v650, 0.0
    %673 = vadd.xlane.f32.xlu0 %v672
    %v674 = vpop.xlane.xlu0 %673
    %v676 = vsel %vm394, %v636, 0
    %678 = vmatpush.msra.mxu0 0.0
    %679 = vmatpush.msra.mxu0 0.0
    %680 = vmatpush.msra.mxu0 0.0
    %681 = vmatpush.msra.mxu0 0.0
    %682 = vmatpush.msra.mxu0 0.0
    %683 = vmatpush.msra.mxu0 0.0
    %684 = vmatpush.msra.mxu0 0.0
    %685 = vmatpush.msra.mxu0 0.0
    %686 = vmatpush.msra.mxu0 0.0
    %687 = vmatpush.msra.mxu0 0.0
    %688 = vmatpush.msra.mxu0 0.0
    %689 = vmatpush.msra.mxu0 0.0
    %690 = vmatpush.msra.mxu0 0.0
    %691 = vmatpush.msra.mxu0 0.0
    %692 = vmatpush.msra.mxu0 0.0
    %693 = vmatpush.msra.mxu0 %v311
    %694 = vmatmul.f32.gmra.mxu0 %v676
    %v695 = vpop.f32.mrf.mxu0
    %v696 = vadd.f32 0.0, %v695
    %697 = vdwg.mxu0
    %v699 = vsel %vm394, %v638, 0
    %701 = vmatpush.msra.mxu0 0.0
    %702 = vmatpush.msra.mxu0 0.0
    %703 = vmatpush.msra.mxu0 0.0
    %704 = vmatpush.msra.mxu0 0.0
    %705 = vmatpush.msra.mxu0 0.0
    %706 = vmatpush.msra.mxu0 0.0
    %707 = vmatpush.msra.mxu0 0.0
    %708 = vmatpush.msra.mxu0 0.0
    %709 = vmatpush.msra.mxu0 0.0
    %710 = vmatpush.msra.mxu0 0.0
    %711 = vmatpush.msra.mxu0 0.0
    %712 = vmatpush.msra.mxu0 0.0
    %713 = vmatpush.msra.mxu0 0.0
    %714 = vmatpush.msra.mxu0 0.0
    %715 = vmatpush.msra.mxu0 0.0
    %716 = vmatpush.msra.mxu0 %v314
    %717 = vmatmul.f32.gmra.mxu0 %v699
    %v718 = vpop.f32.mrf.mxu0
    %v719 = vadd.f32 0.0, %v718
    %720 = vdwg.mxu0
    %v722 = vsel %vm394, %v640, 0
    %724 = vmatpush.msra.mxu0 0.0
    %725 = vmatpush.msra.mxu0 0.0
    %726 = vmatpush.msra.mxu0 0.0
    %727 = vmatpush.msra.mxu0 0.0
    %728 = vmatpush.msra.mxu0 0.0
    %729 = vmatpush.msra.mxu0 0.0
    %730 = vmatpush.msra.mxu0 0.0
    %731 = vmatpush.msra.mxu0 0.0
    %732 = vmatpush.msra.mxu0 0.0
    %733 = vmatpush.msra.mxu0 0.0
    %734 = vmatpush.msra.mxu0 0.0
    %735 = vmatpush.msra.mxu0 0.0
    %736 = vmatpush.msra.mxu0 0.0
    %737 = vmatpush.msra.mxu0 0.0
    %738 = vmatpush.msra.mxu0 0.0
    %739 = vmatpush.msra.mxu0 %v337
    %740 = vmatmul.f32.gmra.mxu0 %v722
    %v741 = vpop.f32.mrf.mxu0
    %v742 = vadd.f32 0.0, %v741
    %743 = vdwg.mxu0
    %v745 = vsel %vm394, %v642, 0
    %747 = vmatpush.msra.mxu0 0.0
    %748 = vmatpush.msra.mxu0 0.0
    %749 = vmatpush.msra.mxu0 0.0
    %750 = vmatpush.msra.mxu0 0.0
    %751 = vmatpush.msra.mxu0 0.0
    %752 = vmatpush.msra.mxu0 0.0
    %753 = vmatpush.msra.mxu0 0.0
    %754 = vmatpush.msra.mxu0 0.0
    %755 = vmatpush.msra.mxu0 0.0
    %756 = vmatpush.msra.mxu0 0.0
    %757 = vmatpush.msra.mxu0 0.0
    %758 = vmatpush.msra.mxu0 0.0
    %759 = vmatpush.msra.mxu0 0.0
    %760 = vmatpush.msra.mxu0 0.0
    %761 = vmatpush.msra.mxu0 0.0
    %762 = vmatpush.msra.mxu0 %v340
    %763 = vmatmul.f32.gmra.mxu0 %v745
    %v764 = vpop.f32.mrf.mxu0
    %v765 = vadd.f32 0.0, %v764
    %766 = vdwg.mxu0
    %v768 = vsel %vm394, %v644, 0
    %770 = vmatpush.msra.mxu0 0.0
    %771 = vmatpush.msra.mxu0 0.0
    %772 = vmatpush.msra.mxu0 0.0
    %773 = vmatpush.msra.mxu0 0.0
    %774 = vmatpush.msra.mxu0 0.0
    %775 = vmatpush.msra.mxu0 0.0
    %776 = vmatpush.msra.mxu0 0.0
    %777 = vmatpush.msra.mxu0 0.0
    %778 = vmatpush.msra.mxu0 0.0
    %779 = vmatpush.msra.mxu0 0.0
    %780 = vmatpush.msra.mxu0 0.0
    %781 = vmatpush.msra.mxu0 0.0
    %782 = vmatpush.msra.mxu0 0.0
    %783 = vmatpush.msra.mxu0 0.0
    %784 = vmatpush.msra.mxu0 0.0
    %785 = vmatpush.msra.mxu0 %v363
    %786 = vmatmul.f32.gmra.mxu0 %v768
    %v787 = vpop.f32.mrf.mxu0
    %v788 = vadd.f32 0.0, %v787
    %789 = vdwg.mxu0
    %v791 = vsel %vm394, %v646, 0
    %793 = vmatpush.msra.mxu0 0.0
    %794 = vmatpush.msra.mxu0 0.0
    %795 = vmatpush.msra.mxu0 0.0
    %796 = vmatpush.msra.mxu0 0.0
    %797 = vmatpush.msra.mxu0 0.0
    %798 = vmatpush.msra.mxu0 0.0
    %799 = vmatpush.msra.mxu0 0.0
    %800 = vmatpush.msra.mxu0 0.0
    %801 = vmatpush.msra.mxu0 0.0
    %802 = vmatpush.msra.mxu0 0.0
    %803 = vmatpush.msra.mxu0 0.0
    %804 = vmatpush.msra.mxu0 0.0
    %805 = vmatpush.msra.mxu0 0.0
    %806 = vmatpush.msra.mxu0 0.0
    %807 = vmatpush.msra.mxu0 0.0
    %808 = vmatpush.msra.mxu0 %v366
    %809 = vmatmul.f32.gmra.mxu0 %v791
    %v810 = vpop.f32.mrf.mxu0
    %v811 = vadd.f32 0.0, %v810
    %812 = vdwg.mxu0
    %v814 = vsel %vm394, %v648, 0
    %816 = vmatpush.msra.mxu0 0.0
    %817 = vmatpush.msra.mxu0 0.0
    %818 = vmatpush.msra.mxu0 0.0
    %819 = vmatpush.msra.mxu0 0.0
    %820 = vmatpush.msra.mxu0 0.0
    %821 = vmatpush.msra.mxu0 0.0
    %822 = vmatpush.msra.mxu0 0.0
    %823 = vmatpush.msra.mxu0 0.0
    %824 = vmatpush.msra.mxu0 0.0
    %825 = vmatpush.msra.mxu0 0.0
    %826 = vmatpush.msra.mxu0 0.0
    %827 = vmatpush.msra.mxu0 0.0
    %828 = vmatpush.msra.mxu0 0.0
    %829 = vmatpush.msra.mxu0 0.0
    %830 = vmatpush.msra.mxu0 0.0
    %831 = vmatpush.msra.mxu0 %v389
    %832 = vmatmul.f32.gmra.mxu0 %v814
    %v833 = vpop.f32.mrf.mxu0
    %v834 = vadd.f32 0.0, %v833
    %835 = vdwg.mxu0
    %v837 = vsel %vm394, %v650, 0
    %839 = vmatpush.msra.mxu0 0.0
    %840 = vmatpush.msra.mxu0 0.0
    %841 = vmatpush.msra.mxu0 0.0
    %842 = vmatpush.msra.mxu0 0.0
    %843 = vmatpush.msra.mxu0 0.0
    %844 = vmatpush.msra.mxu0 0.0
    %845 = vmatpush.msra.mxu0 0.0
    %846 = vmatpush.msra.mxu0 0.0
    %847 = vmatpush.msra.mxu0 0.0
    %848 = vmatpush.msra.mxu0 0.0
    %849 = vmatpush.msra.mxu0 0.0
    %850 = vmatpush.msra.mxu0 0.0
    %851 = vmatpush.msra.mxu0 0.0
    %852 = vmatpush.msra.mxu0 0.0
    %853 = vmatpush.msra.mxu0 0.0
    %854 = vmatpush.msra.mxu0 %v392
    %855 = vmatmul.f32.gmra.mxu0 %v837
    %v856 = vpop.f32.mrf.mxu0
    %v857 = vadd.f32 0.0, %v856
    %858 = vdwg.mxu0
    %v859 = vrcp.pop %v653
    %v860 = vmul.f32 %v653, %v859
    %v861 = vsub.f32 1.0, %v860
    %v862 = vmul.f32 %v859, %v861
    %v863 = vadd.f32 %v859, %v862
    %vm864 = vweird.f32 %v653
    %vm865 = vweird.f32 %v859
    %vm866 = vmor %vm864, %vm865
    %v867 = vsel %vm866, %v859, %v863
    %v868 = vand.u32 2147483647, %v653
    %vm869 = vcmp.eq.f32.partialorder %v868, 8.507059e+37
    %v870 = vand.u32 %v653, 2147483648
    %v871 = vor.u32 1.1754944e-38, %v870
    %v872 = vsel %vm869, %v871, %v867
    %v873 = vmul.f32 %v696, %v872
    %v874 = vrcp.pop %v656
    %v875 = vmul.f32 %v656, %v874
    %v876 = vsub.f32 1.0, %v875
    %v877 = vmul.f32 %v874, %v876
    %v878 = vadd.f32 %v874, %v877
    %vm879 = vweird.f32 %v656
    %vm880 = vweird.f32 %v874
    %vm881 = vmor %vm879, %vm880
    %v882 = vsel %vm881, %v874, %v878
    %v883 = vand.u32 2147483647, %v656
    %vm884 = vcmp.eq.f32.partialorder %v883, 8.507059e+37
    %v885 = vand.u32 %v656, 2147483648
    %v886 = vor.u32 1.1754944e-38, %v885
    %v887 = vsel %vm884, %v886, %v882
    %v888 = vmul.f32 %v719, %v887
    %v889 = vrcp.pop %v659
    %v890 = vmul.f32 %v659, %v889
    %v891 = vsub.f32 1.0, %v890
    %v892 = vmul.f32 %v889, %v891
    %v893 = vadd.f32 %v889, %v892
    %vm894 = vweird.f32 %v659
    %vm895 = vweird.f32 %v889
    %vm896 = vmor %vm894, %vm895
    %v897 = vsel %vm896, %v889, %v893
    %v898 = vand.u32 2147483647, %v659
    %vm899 = vcmp.eq.f32.partialorder %v898, 8.507059e+37
    %v900 = vand.u32 %v659, 2147483648
    %v901 = vor.u32 1.1754944e-38, %v900
    %v902 = vsel %vm899, %v901, %v897
    %v903 = vmul.f32 %v742, %v902
    %v904 = vrcp.pop %v662
    %v905 = vmul.f32 %v662, %v904
    %v906 = vsub.f32 1.0, %v905
    %v907 = vmul.f32 %v904, %v906
    %v908 = vadd.f32 %v904, %v907
    %vm909 = vweird.f32 %v662
    %vm910 = vweird.f32 %v904
    %vm911 = vmor %vm909, %vm910
    %v912 = vsel %vm911, %v904, %v908
    %v913 = vand.u32 2147483647, %v662
    %vm914 = vcmp.eq.f32.partialorder %v913, 8.507059e+37
    %v915 = vand.u32 %v662, 2147483648
    %v916 = vor.u32 1.1754944e-38, %v915
    %v917 = vsel %vm914, %v916, %v912
    %v918 = vmul.f32 %v765, %v917
    %v919 = vrcp.pop %v665
    %v920 = vmul.f32 %v665, %v919
    %v921 = vsub.f32 1.0, %v920
    %v922 = vmul.f32 %v919, %v921
    %v923 = vadd.f32 %v919, %v922
    %vm924 = vweird.f32 %v665
    %vm925 = vweird.f32 %v919
    %vm926 = vmor %vm924, %vm925
    %v927 = vsel %vm926, %v919, %v923
    %v928 = vand.u32 2147483647, %v665
    %vm929 = vcmp.eq.f32.partialorder %v928, 8.507059e+37
    %v930 = vand.u32 %v665, 2147483648
    %v931 = vor.u32 1.1754944e-38, %v930
    %v932 = vsel %vm929, %v931, %v927
    %v933 = vmul.f32 %v788, %v932
    %v934 = vrcp.pop %v668
    %v935 = vmul.f32 %v668, %v934
    %v936 = vsub.f32 1.0, %v935
    %v937 = vmul.f32 %v934, %v936
    %v938 = vadd.f32 %v934, %v937
    %vm939 = vweird.f32 %v668
    %vm940 = vweird.f32 %v934
    %vm941 = vmor %vm939, %vm940
    %v942 = vsel %vm941, %v934, %v938
    %v943 = vand.u32 2147483647, %v668
    %vm944 = vcmp.eq.f32.partialorder %v943, 8.507059e+37
    %v945 = vand.u32 %v668, 2147483648
    %v946 = vor.u32 1.1754944e-38, %v945
    %v947 = vsel %vm944, %v946, %v942
    %v948 = vmul.f32 %v811, %v947
    %v949 = vrcp.pop %v671
    %v950 = vmul.f32 %v671, %v949
    %v951 = vsub.f32 1.0, %v950
    %v952 = vmul.f32 %v949, %v951
    %v953 = vadd.f32 %v949, %v952
    %vm954 = vweird.f32 %v671
    %vm955 = vweird.f32 %v949
    %vm956 = vmor %vm954, %vm955
    %v957 = vsel %vm956, %v949, %v953
    %v958 = vand.u32 2147483647, %v671
    %vm959 = vcmp.eq.f32.partialorder %v958, 8.507059e+37
    %v960 = vand.u32 %v671, 2147483648
    %v961 = vor.u32 1.1754944e-38, %v960
    %v962 = vsel %vm959, %v961, %v957
    %v963 = vmul.f32 %v834, %v962
    %v964 = vrcp.pop %v674
    %v965 = vmul.f32 %v674, %v964
    %v966 = vsub.f32 1.0, %v965
    %v967 = vmul.f32 %v964, %v966
    %v968 = vadd.f32 %v964, %v967
    %vm969 = vweird.f32 %v674
    %vm970 = vweird.f32 %v964
    %vm971 = vmor %vm969, %vm970
    %v972 = vsel %vm971, %v964, %v968
    %v973 = vand.u32 2147483647, %v674
    %vm974 = vcmp.eq.f32.partialorder %v973, 8.507059e+37
    %v975 = vand.u32 %v674, 2147483648
    %v976 = vor.u32 1.1754944e-38, %v975
    %v977 = vsel %vm974, %v976, %v972
    %v978 = vmul.f32 %v857, %v977
    %v980 = vsel %vm394, %v873, 0
    %v983 = vsel %vm394, %v888, 0
    %985 = vmatpush.msra.mxu0 0.0
    %986 = vmatpush.msra.mxu0 0.0
    %987 = vmatpush.msra.mxu0 0.0
    %988 = vmatpush.msra.mxu0 0.0
    %989 = vmatpush.msra.mxu0 0.0
    %990 = vmatpush.msra.mxu0 0.0
    %991 = vmatpush.msra.mxu0 0.0
    %992 = vmatpush.msra.mxu0 0.0
    %993 = vmatpush.msra.mxu0 0.0
    %994 = vmatpush.msra.mxu0 0.0
    %995 = vmatpush.msra.mxu0 0.0
    %996 = vmatpush.msra.mxu0 0.0
    %997 = vmatpush.msra.mxu0 0.0
    %998 = vmatpush.msra.mxu0 0.0
    %999 = vmatpush.msra.mxu0 0.0
    %1000 = vmatpush.msra.mxu0 %v58
    %1001 = vmatmul.f32.gmra.mxu0 %v980
    %v1002 = vpop.f32.mrf.mxu0
    %v1003 = vadd.f32 0.0, %v1002
    %1004 = vmatmul.f32.gmra.mxu0 %v983
    %v1005 = vpop.f32.mrf.mxu0
    %v1006 = vadd.f32 0.0, %v1005
    %1007 = vdwg.mxu0
    %v1009 = vsel %vm394, %v903, 0
    %v1012 = vsel %vm394, %v918, 0
    %1014 = vmatpush.msra.mxu0 0.0
    %1015 = vmatpush.msra.mxu0 0.0
    %1016 = vmatpush.msra.mxu0 0.0
    %1017 = vmatpush.msra.mxu0 0.0
    %1018 = vmatpush.msra.mxu0 0.0
    %1019 = vmatpush.msra.mxu0 0.0
    %1020 = vmatpush.msra.mxu0 0.0
    %1021 = vmatpush.msra.mxu0 0.0
    %1022 = vmatpush.msra.mxu0 0.0
    %1023 = vmatpush.msra.mxu0 0.0
    %1024 = vmatpush.msra.mxu0 0.0
    %1025 = vmatpush.msra.mxu0 0.0
    %1026 = vmatpush.msra.mxu0 0.0
    %1027 = vmatpush.msra.mxu0 0.0
    %1028 = vmatpush.msra.mxu0 0.0
    %1029 = vmatpush.msra.mxu0 %v59
    %1030 = vmatmul.f32.gmra.mxu0 %v1009
    %v1031 = vpop.f32.mrf.mxu0
    %v1032 = vadd.f32 0.0, %v1031
    %1033 = vmatmul.f32.gmra.mxu0 %v1012
    %v1034 = vpop.f32.mrf.mxu0
    %v1035 = vadd.f32 0.0, %v1034
    %1036 = vdwg.mxu0
    %v1038 = vsel %vm394, %v933, 0
    %v1041 = vsel %vm394, %v948, 0
    %1043 = vmatpush.msra.mxu0 0.0
    %1044 = vmatpush.msra.mxu0 0.0
    %1045 = vmatpush.msra.mxu0 0.0
    %1046 = vmatpush.msra.mxu0 0.0
    %1047 = vmatpush.msra.mxu0 0.0
    %1048 = vmatpush.msra.mxu0 0.0
    %1049 = vmatpush.msra.mxu0 0.0
    %1050 = vmatpush.msra.mxu0 0.0
    %1051 = vmatpush.msra.mxu0 0.0
    %1052 = vmatpush.msra.mxu0 0.0
    %1053 = vmatpush.msra.mxu0 0.0
    %1054 = vmatpush.msra.mxu0 0.0
    %1055 = vmatpush.msra.mxu0 0.0
    %1056 = vmatpush.msra.mxu0 0.0
    %1057 = vmatpush.msra.mxu0 0.0
    %1058 = vmatpush.msra.mxu0 %v60
    %1059 = vmatmul.f32.gmra.mxu0 %v1038
    %v1060 = vpop.f32.mrf.mxu0
    %v1061 = vadd.f32 0.0, %v1060
    %1062 = vmatmul.f32.gmra.mxu0 %v1041
    %v1063 = vpop.f32.mrf.mxu0
    %v1064 = vadd.f32 0.0, %v1063
    %1065 = vdwg.mxu0
    %v1067 = vsel %vm394, %v963, 0
    %v1070 = vsel %vm394, %v978, 0
    %1072 = vmatpush.msra.mxu0 0.0
    %1073 = vmatpush.msra.mxu0 0.0
    %1074 = vmatpush.msra.mxu0 0.0
    %1075 = vmatpush.msra.mxu0 0.0
    %1076 = vmatpush.msra.mxu0 0.0
    %1077 = vmatpush.msra.mxu0 0.0
    %1078 = vmatpush.msra.mxu0 0.0
    %1079 = vmatpush.msra.mxu0 0.0
    %1080 = vmatpush.msra.mxu0 0.0
    %1081 = vmatpush.msra.mxu0 0.0
    %1082 = vmatpush.msra.mxu0 0.0
    %1083 = vmatpush.msra.mxu0 0.0
    %1084 = vmatpush.msra.mxu0 0.0
    %1085 = vmatpush.msra.mxu0 0.0
    %1086 = vmatpush.msra.mxu0 0.0
    %1087 = vmatpush.msra.mxu0 %v61
    %1088 = vmatmul.f32.gmra.mxu0 %v1067
    %v1089 = vpop.f32.mrf.mxu0
    %v1090 = vadd.f32 0.0, %v1089
    %1091 = vmatmul.f32.gmra.mxu0 %v1070
    %v1092 = vpop.f32.mrf.mxu0
    %v1093 = vadd.f32 0.0, %v1092
    %1094 = vdwg.mxu0
    %v1095 = vsel %vm75, %v1003, 0.0
    %v1096 = vsel %vm75, %v1032, 0.0
    %v1097 = vadd.f32 %v1095, %v1096
    %v1098 = vsel %vm75, %v1061, 0.0
    %v1099 = vadd.f32 %v1097, %v1098
    %v1100 = vsel %vm75, %v1090, 0.0
    %v1101 = vadd.f32 %v1099, %v1100
    %v1102 = vsel %vm75, %v1006, 0.0
    %v1103 = vsel %vm75, %v1035, 0.0
    %v1104 = vadd.f32 %v1102, %v1103
    %v1105 = vsel %vm75, %v1064, 0.0
    %v1106 = vadd.f32 %v1104, %v1105
    %v1107 = vsel %vm75, %v1093, 0.0
    %v1108 = vadd.f32 %v1106, %v1107
    %v1109 = vperm.slane %v74, 0
    %v1110 = vadd.f32 %v1101, %v1109
    %v1111 = vadd.f32 %v1108, %v1109
    %v1112 = vadd.f32 %v44, %v1110
    %v1113 = vadd.f32 %v45, %v1111
    %v1114 = vsel %vm75, %v1112, 0.0
    %v1115 = vsel %vm75, %v1113, 0.0
    %v1116 = vadd.f32 %v1114, %v1115
    %v1117 = vrot.slane %v1116, 4
    %v1118 = vadd.f32 %v1116, %v1117
    %v1119 = vrot.slane %v1118, 2
    %v1120 = vadd.f32 %v1118, %v1119
    %v1121 = vrot.slane %v1120, 1
    %v1122 = vadd.f32 %v1120, %v1121
    %v1123 = vrcp.pop 16.0
    %v1124 = vmul.f32 16.0, %v1123
    %v1125 = vsub.f32 1.0, %v1124
    %v1126 = vmul.f32 %v1123, %v1125
    %v1127 = vadd.f32 %v1123, %v1126
    %vm1128 = vweird.f32 %v1123
    %v1129 = vsel %vm1128, %v1123, %v1127
    %v1130 = vmul.f32 %v1122, %v1129
    %v1131 = vsub.f32 %v1112, %v1130
    %v1132 = vsub.f32 %v1113, %v1130
    %v1133 = vmul.f32 %v1131, %v1131
    %v1134 = vmul.f32 %v1132, %v1132
    %v1135 = vsel %vm75, %v1133, 0.0
    %v1136 = vsel %vm75, %v1134, 0.0
    %v1137 = vadd.f32 %v1135, %v1136
    %v1138 = vrot.slane %v1137, 4
    %v1139 = vadd.f32 %v1137, %v1138
    %v1140 = vrot.slane %v1139, 2
    %v1141 = vadd.f32 %v1139, %v1140
    %v1142 = vrot.slane %v1141, 1
    %v1143 = vadd.f32 %v1141, %v1142
    %v1144 = vmul.f32 %v1143, %v1129
    %v1145 = vadd.f32 %v1144, 1e-05
    %v1146 = vrsqrt.pop %v1145
    %v1147 = vmul.f32 %v1146, %v1145
    %v1148 = vmul.f32 %v1147, %v1146
    %v1149 = vmul.f32 0.5, %v1148
    %v1150 = vsub.f32 1.5, %v1149
    %v1151 = vmul.f32 %v1146, %v1150
    %vm1152 = vweird.f32 %v1145
    %vm1153 = vweird.f32 %v1146
    %vm1154 = vmor %vm1152, %vm1153
    %v1155 = vsel %vm1154, %v1146, %v1151
    %v1156 = vmul.f32 %v1131, %v1155
    %v1157 = vmul.f32 %v1132, %v1155
    %v1158 = vperm.slane %v74, 1
    %v1159 = vmul.f32 %v1156, %v1158
    %v1160 = vmul.f32 %v1157, %v1158
    %v1161 = vperm.slane %v74, 2
    %v1162 = vadd.f32 %v1159, %v1161
    %v1163 = vadd.f32 %v1160, %v1161
    %v1164 = vperm.slane %v74, 6
    %v1166 = vsel %vm75, %v1162, 0
    %v1169 = vsel %vm75, %v1163, 0
    %1171 = vmatpush.msra.mxu0 0.0
    %1172 = vmatpush.msra.mxu0 0.0
    %1173 = vmatpush.msra.mxu0 0.0
    %1174 = vmatpush.msra.mxu0 0.0
    %1175 = vmatpush.msra.mxu0 0.0
    %1176 = vmatpush.msra.mxu0 0.0
    %1177 = vmatpush.msra.mxu0 0.0
    %1178 = vmatpush.msra.mxu0 0.0
    %1179 = vmatpush.msra.mxu0 0.0
    %1180 = vmatpush.msra.mxu0 0.0
    %1181 = vmatpush.msra.mxu0 0.0
    %1182 = vmatpush.msra.mxu0 0.0
    %1183 = vmatpush.msra.mxu0 %v65
    %1184 = vmatpush.msra.mxu0 %v64
    %1185 = vmatpush.msra.mxu0 %v63
    %1186 = vmatpush.msra.mxu0 %v62
    %1187 = vmatmul.f32.gmra.mxu0 %v1166
    %v1188 = vpop.f32.mrf.mxu0
    %v1189 = vadd.f32 %v1164, %v1188
    %1190 = vmatmul.f32.gmra.mxu0 %v1169
    %v1191 = vpop.f32.mrf.mxu0
    %v1192 = vadd.f32 %v1164, %v1191
    %1193 = vdwg.mxu0
    %v1194 = vmax.f32 %v1189, 0.0
    %v1195 = vmax.f32 %v1192, 0.0
    %v1196 = vperm.slane %v74, 3
    %vm1197 = vcmask 523264
    %v1199 = vsel %vm1197, %v1194, 0
    %v1202 = vsel %vm1197, %v1195, 0
    %1204 = vmatpush.msra.mxu0 0.0
    %1205 = vmatpush.msra.mxu0 0.0
    %1206 = vmatpush.msra.mxu0 0.0
    %1207 = vmatpush.msra.mxu0 0.0
    %1208 = vmatpush.msra.mxu0 0.0
    %1209 = vmatpush.msra.mxu0 0.0
    %1210 = vmatpush.msra.mxu0 0.0
    %1211 = vmatpush.msra.mxu0 0.0
    %1212 = vmatpush.msra.mxu0 %v73
    %1213 = vmatpush.msra.mxu0 %v72
    %1214 = vmatpush.msra.mxu0 %v71
    %1215 = vmatpush.msra.mxu0 %v70
    %1216 = vmatpush.msra.mxu0 %v69
    %1217 = vmatpush.msra.mxu0 %v68
    %1218 = vmatpush.msra.mxu0 %v67
    %1219 = vmatpush.msra.mxu0 %v66
    %1220 = vmatmul.f32.gmra.mxu0 %v1199
    %v1221 = vpop.f32.mrf.mxu0
    %v1222 = vadd.f32 %v1196, %v1221
    %1223 = vmatmul.f32.gmra.mxu0 %v1202
    %v1224 = vpop.f32.mrf.mxu0
    %v1225 = vadd.f32 %v1196, %v1224
    %1226 = vdwg.mxu0
    %v1227 = vadd.f32 %v1162, %v1222
    %v1228 = vadd.f32 %v1163, %v1225
    %v1229 = vsel %vm75, %v1227, 0.0
    %v1230 = vsel %vm75, %v1228, 0.0
    %v1231 = vadd.f32 %v1229, %v1230
    %v1232 = vrot.slane %v1231, 4
    %v1233 = vadd.f32 %v1231, %v1232
    %v1234 = vrot.slane %v1233, 2
    %v1235 = vadd.f32 %v1233, %v1234
    %v1236 = vrot.slane %v1235, 1
    %v1237 = vadd.f32 %v1235, %v1236
    %v1238 = vmul.f32 %v1237, %v1129
    %v1239 = vsub.f32 %v1227, %v1238
    %v1240 = vsub.f32 %v1228, %v1238
    %v1241 = vmul.f32 %v1239, %v1239
    %v1242 = vmul.f32 %v1240, %v1240
    %v1243 = vsel %vm75, %v1241, 0.0
    %v1244 = vsel %vm75, %v1242, 0.0
    %v1245 = vadd.f32 %v1243, %v1244
    %v1246 = vrot.slane %v1245, 4
    %v1247 = vadd.f32 %v1245, %v1246
    %v1248 = vrot.slane %v1247, 2
    %v1249 = vadd.f32 %v1247, %v1248
    %v1250 = vrot.slane %v1249, 1
    %v1251 = vadd.f32 %v1249, %v1250
    %v1252 = vmul.f32 %v1251, %v1129
    %v1253 = vadd.f32 %v1252, 1e-05
    %v1254 = vrsqrt.pop %v1253
    %v1255 = vmul.f32 %v1254, %v1253
    %v1256 = vmul.f32 %v1255, %v1254
    %v1257 = vmul.f32 0.5, %v1256
    %v1258 = vsub.f32 1.5, %v1257
    %v1259 = vmul.f32 %v1254, %v1258
    %vm1260 = vweird.f32 %v1253
    %vm1261 = vweird.f32 %v1254
    %vm1262 = vmor %vm1260, %vm1261
    %v1263 = vsel %vm1262, %v1254, %v1259
    %v1264 = vmul.f32 %v1239, %v1263
    %v1265 = vmul.f32 %v1240, %v1263
    %v1266 = vperm.slane %v74, 4
    %v1267 = vmul.f32 %v1264, %v1266
    %v1268 = vmul.f32 %v1265, %v1266
    %v1269 = vperm.slane %v74, 5
    %v1270 = vadd.f32 %v1267, %v1269
    %v1271 = vadd.f32 %v1268, %v1269
    %1272 = vst.msk [vmem:[#allocation7] sm:$0xff] %vm75, %v1270
    %1273 = vst.msk [vmem:[#allocation7 + $0x8] sm:$0xff] %vm75, %v1271
    // Predicated region
    $region18: #{tpu_custom_call.1} parent=1 // pred_check
      _
    $region19: #{tpu_custom_call.1} parent=1 // pred_check_branch
      %1275 = sbr.rel (0) target = $region21
    $region20: #{tpu_custom_call.1} parent=1 // pred_region
      %1277 = vsyncadd [#allocation4], 0
      %s1278 = sshll.u32 [#allocation7], 4
      %s1279 = int_to_ptr.vmem [resolvable:$true] %s1278
      %s1280 = sshll.u32 %s2, 4
      %s1281 = int_to_ptr.hbm [resolvable:$true] %s1280
      %1286 = dma.vmem_to_hbm [thread:$0]  %s1279, 256, %s1281, [#allocation4], 128, 128, 8
    $region21: #{tpu_custom_call.1} parent=1 // pred_fallthru
      _
    // Predicated region
    $region22: #{tpu_custom_call.1} parent=1 // pred_check
      _
    $region23: #{tpu_custom_call.1} parent=1 // pred_check_branch
      %1288 = sbr.rel (0) target = $region25
    $region24: #{tpu_custom_call.1} parent=1 // pred_region
      %1290 = dma.done [#allocation4], 256
    $region25: #{tpu_custom_call.1} parent=1 // pred_fallthru
      _
    %1291 = vsyncpa [#allocation3], 1
    %1292 = vsyncpa [#allocation6], 1
    %1293 = vsyncpa [#allocation4], 1

</llo_original>
